<compile_context>
chip_gen: v7x
topology: tpu7x:2x2x1
jax: 0.10.0
libtpu: 0.0.40
codegen_flags: <defaults>
</compile_context>

<pallas_src>
import functools

import jax
import jax.numpy as jnp
from jax.experimental import pallas as pl
from jax.experimental.pallas import tpu as pltpu


# ----------------------------------------------------------------------------
# Per-generation budgets
# ----------------------------------------------------------------------------
def _hw_budgets():
    """Return (spatial tile target, vmem_limit_bytes) tuned per TPU gen."""
    vmem_cap = 64 * 1024 * 1024
    try:
        vmem_cap = int(pltpu.get_tpu_info().vmem_capacity_bytes)
    except Exception:  # stay robust to platform / API differences
        pass
    if vmem_cap <= 64 * 1024 * 1024:          # v7x-class: 64 MiB VMEM per TC
        return 2048, 48 * 1024 * 1024
    return 4096, 96 * 1024 * 1024             # v5e / v6e: 128 MiB physical


def _pick_spatial_tile(HW, target):
    """Largest multiple of 128 that divides HW and is <= target (else HW)."""
    if HW % 128 != 0 or HW <= target:
        return HW
    t = (target // 128) * 128
    while t >= 128:
        if HW % t == 0:
            return t
        t -= 128
    return HW


# ----------------------------------------------------------------------------
# Pallas kernel: fused (channel-concat -> 3x3 conv SAME -> BN affine -> ReLU)
# Layout: NCHW, spatial flattened onto the lane axis, tiled in T-column slabs.
# ----------------------------------------------------------------------------
def _conv3x3_bn_relu_kernel(*refs, n_in, cps, W, T):
    # refs = (x_ref_0 .. x_ref_{n_in-1}, w_ref, sb_ref, o_ref, patch_ref)
    #   x_ref_j   : (1, cps[j], L)   flat-padded piece (channels pre-padded), bf16
    #   w_ref     : (Cout, K)        im2col weight matrix (K = 9*sum(cps)), bf16
    #   sb_ref    : (2, Cout, 1)     folded BN scale / bias, f32
    #   o_ref     : (1, Cout, T)     output tile (lane-dense), bf16
    #   patch_ref : (K, T)           per-tile im2col scratch, bf16
    x_refs = refs[:n_in]
    w_ref = refs[n_in]
    sb_ref = refs[n_in + 1]
    o_ref = refs[n_in + 2]
    patch_ref = refs[n_in + 3]

    CP = sum(cps)
    Tv = T + 2 * W                       # width of one dx-shifted variant
    t0 = pl.program_id(1) * T            # lane offset of this spatial tile
    if T % 128 == 0:
        t0 = pl.multiple_of(t0, 128)

    # Output-column index each variant element maps to (independent of dy).
    col = (jax.lax.broadcasted_iota(jnp.int32, (1, Tv), 1) + t0) % W
    not_left = col != 0                  # dx=0 taps read column -1  -> zero
    not_right = col != (W - 1)           # dx=2 taps read column  W  -> zero

    off = 0
    for j in range(n_in):                # statically unrolled over concat pieces
        cp = cps[j]
        # One halo-slab load per piece (start is 128-aligned).
        slab = x_refs[j][0, :, pl.ds(t0, Tv + 2)]          # (cp, T + 2W + 2)
        for dx in range(3):              # dx shift + edge mask hoisted out of dy
            v = slab[:, dx:dx + Tv]                        # (cp, Tv)
            if dx == 0:
                v = jnp.where(not_left, v, jnp.zeros_like(v))
            elif dx == 2:
                v = jnp.where(not_right, v, jnp.zeros_like(v))
            for dy in range(3):
                tap = dy * 3 + dx
                row0 = tap * CP + off                      # multiple of 8
                patch_ref[pl.ds(row0, cp), :] = v[:, dy * W:dy * W + T]
        off += cp

    # One MXU matmul per tile: (Cout, K) @ (K, T) -> f32 (Cout, T), lane-dense.
    acc = jnp.dot(w_ref[...], patch_ref[...], preferred_element_type=jnp.float32)
    y = acc * sb_ref[0] + sb_ref[1]                        # folded BN (eval)
    o_ref[0] = jnp.maximum(y, 0.0).astype(o_ref.dtype)     # ReLU, cast to bf16


def conv3x3_bn_relu_pallas(x_list, w, scale, bias, *,
                           compute_dtype=jnp.bfloat16, out_dtype=jnp.bfloat16):
    """Fused CatBlock + conv3x3(SAME, no bias) + BN(eval) + ReLU.

    x_list : list of NCHW (B, Cin_j, H, W) tensors to concatenate on channels
    w      : (3, 3, sum(Cin_j), Cout)
    scale, bias : (Cout,) folded BatchNorm affine
    """
    B, _, H, W = x_list[0].shape
    cins = tuple(int(t.shape[1]) for t in x_list)
    cin_total = sum(cins)
    assert w.shape[:3] == (3, 3, cin_total), (w.shape, cins)
    Cout = int(w.shape[-1])
    HW = H * W

    ALIGN = 8                                  # sublane alignment of patch rows
    cps = tuple(-(-c // ALIGN) * ALIGN for c in cins)
    CP = sum(cps)
    K = 9 * CP

    t_target, vmem_limit = _hw_budgets()
    T = _pick_spatial_tile(HW, t_target)
    num_tiles = HW // T

    # Flat spatial padding: W+1 zeros on the left, >= W+1 on the right, total
    # length rounded to a multiple of 128 so input blocks are lane-aligned.
    lpad = W + 1
    L = -(-(HW + 2 * (W + 1)) // 128) * 128
    rpad = L - HW - lpad

    # Cast to bf16, pad channels to cps[j] (zero rows) and pad spatially; both
    # pads fuse with the cast in XLA.  (Real UNet++ channel counts are already
    # multiples of 8, so the channel pad is a no-op in production.)
    xfs = [
        jnp.pad(t.reshape(B, c, HW).astype(compute_dtype),
                ((0, 0), (0, cp - c), (lpad, rpad)))
        for t, c, cp in zip(x_list, cins, cps)
    ]

    # (Cout, K) weight matrix: tap-major, per-piece channel blocks padded to cps.
    w9 = w.reshape(9, cin_total, Cout)
    pieces, s = [], 0
    for c, cp in zip(cins, cps):
        wp = w9[:, s:s + c, :]
        if cp != c:
            wp = jnp.pad(wp, ((0, 0), (0, cp - c), (0, 0)))
        pieces.append(wp)
        s += c
    w_mat = jnp.transpose(jnp.concatenate(pieces, axis=1).reshape(K, Cout),
                          (1, 0)).astype(compute_dtype)

    sb = jnp.stack([scale, bias]).astype(jnp.float32).reshape(2, Cout, 1)

    kernel = functools.partial(_conv3x3_bn_relu_kernel,
                               n_in=len(x_list), cps=cps, W=W, T=T)

    in_specs = [pl.BlockSpec((1, cp, L), lambda b, t: (b, 0, 0)) for cp in cps]
    in_specs += [
        pl.BlockSpec((Cout, K), lambda b, t: (0, 0)),
        pl.BlockSpec((2, Cout, 1), lambda b, t: (0, 0, 0)),
    ]

    out_bytes = int(jnp.dtype(out_dtype).itemsize)
    cost = pl.CostEstimate(
        flops=int(2 * B * Cout * K * HW),
        transcendentals=0,
        bytes_accessed=int(2 * sum(B * cp * L for cp in cps)
                           + 2 * Cout * K + 8 * Cout
                           + B * Cout * HW * out_bytes))

    out = pl.pallas_call(
        kernel,
        out_shape=jax.ShapeDtypeStruct((B, Cout, HW), out_dtype),
        grid=(B, num_tiles),
        in_specs=in_specs,
        out_specs=pl.BlockSpec((1, Cout, T), lambda b, t: (b, 0, t)),
        scratch_shapes=[pltpu.VMEM((K, T), compute_dtype)],
        compiler_params=pltpu.CompilerParams(
            dimension_semantics=("parallel", "parallel"),
            vmem_limit_bytes=vmem_limit),
        cost_estimate=cost,
    )(*xfs, w_mat, sb)

    return out.reshape(B, Cout, H, W)    # free row-major metadata reshape


# ----------------------------------------------------------------------------
# Pure-JAX reference (same bf16-in / f32-acc / bf16-out numerics)
# ----------------------------------------------------------------------------
def conv3x3_bn_relu_ref(x_list, w, scale, bias, *,
                        compute_dtype=jnp.bfloat16, out_dtype=jnp.bfloat16):
    x = jnp.concatenate(x_list, axis=1).astype(compute_dtype)
    w_oihw = jnp.transpose(w, (3, 2, 0, 1)).astype(compute_dtype)
    y = jax.lax.conv_general_dilated(
        x, w_oihw, window_strides=(1, 1), padding="SAME",
        dimension_numbers=("NCHW", "OIHW", "NCHW"),
        preferred_element_type=jnp.float32)
    y = y * scale[None, :, None, None] + bias[None, :, None, None]
    return jnp.maximum(y, 0.0).astype(out_dtype)


# ----------------------------------------------------------------------------
# Module glue (FixedUnpool, CatBlock, UnetppCatSkipBlock.forward)
# ----------------------------------------------------------------------------
def fixed_unpool(x_nchw):
    """2x nearest-neighbour upsampling (FixedUnpool)."""
    return jnp.repeat(jnp.repeat(x_nchw, 2, axis=2), 2, axis=3)


def unetpp_cat_skip_forward(x, idx, skips, extra_skips, conv_params, conv_fn):
    """Mirror of UnetppCatSkipBlock.forward (NCHW tensors)."""
    sub_network_tensors = None
    if idx < len(skips):
        current_skip = skips[idx]
        all_skips = [current_skip]
        for i, p in enumerate(conv_params):
            prev_feat = fixed_unpool(extra_skips[i])              # up{i}
            cat_inputs = list(all_skips[::-1]) + [prev_feat]      # sub_skip{i+1}
            sub_block = conv_fn(cat_inputs, p["w"], p["scale"], p["bias"])
            all_skips.append(sub_block)                           # x_{..}_{i+1}
        x = jnp.concatenate(all_skips + [x], axis=1)              # final_merge
        sub_network_tensors = all_skips
    return x, sub_network_tensors


def build_conv_params(key, skip_channel_list, skip_index):
    """Replicates UnetppCatSkipBlock.__init__ channel accounting."""
    chls = skip_channel_list[:-1]
    assert skip_index < len(chls)
    current_skip_chl = chls[skip_index]
    conv_in_chl = current_skip_chl
    params = []
    for i in range(skip_index):
        prev_enc_chl = current_skip_chl if i > 0 else chls[skip_index - 1]
        conv_in_chl += prev_enc_chl
        key, k1, k2, k3, k4, k5 = jax.random.split(key, 6)
        w = 0.1 * jax.random.normal(k1, (3, 3, conv_in_chl, current_skip_chl),
                                    jnp.float32)
        gamma = jax.random.uniform(k2, (current_skip_chl,), jnp.float32, 0.5, 1.5)
        beta = 0.1 * jax.random.normal(k3, (current_skip_chl,), jnp.float32)
        mean = 0.1 * jax.random.normal(k4, (current_skip_chl,), jnp.float32)
        var = jax.random.uniform(k5, (current_skip_chl,), jnp.float32, 0.5, 1.5)
        scale = gamma / jnp.sqrt(var + 1e-5)        # BN folded (eval mode)
        bias = beta - mean * scale
        params.append({"w": w, "scale": scale, "bias": bias})
    return params


# ----------------------------------------------------------------------------
if __name__ == "__main__":
    B, H, W = 2, 16, 16
    skip_channel_list = [16, 8, 4, 2]      # encoder channels (deep -> shallow)
    skip_index = 2                         # this decoder level
    idx = 2                                # which encoder skip to use

    key = jax.random.PRNGKey(0)
    keys = jax.random.split(key, 8)

    # Encoder skips (only skips[idx] is read; shapes kept encoder-consistent).
    skips = [
        jax.random.normal(keys[0], (B, 16, H // 4, W // 4), jnp.float32),
        jax.random.normal(keys[1], (B, 8, H // 2, W // 2), jnp.float32),
        jax.random.normal(keys[2], (B, 4, H, W), jnp.float32),
    ]
    # Sub-network tensors from the previous (deeper) layer, half resolution.
    extra_skips = [
        jax.random.normal(keys[3], (B, 8, H // 2, W // 2), jnp.float32),
        jax.random.normal(keys[4], (B, 8, H // 2, W // 2), jnp.float32),
    ]
    # Previous decoder feature (already at skip resolution).
    x = jax.random.normal(keys[5], (B, 8, H, W), jnp.float32)

    conv_params = build_conv_params(keys[6], skip_channel_list, skip_index)

    # Pallas path
    out, subs = unetpp_cat_skip_forward(x, idx, skips, extra_skips,
                                        conv_params, conv3x3_bn_relu_pallas)
    out = jax.block_until_ready(out)
    subs = [jax.block_until_ready(s) for s in subs]

    # Reference path (same bf16-input / f32-accumulate / bf16-output numerics)
    ref_out, _ = unetpp_cat_skip_forward(x, idx, skips, extra_skips,
                                         conv_params, conv3x3_bn_relu_ref)
    ref_out = jax.block_until_ready(ref_out)

    # Shape check: cat([skips[idx], sub1, sub2, x], dim=1)
    expected_c = skip_channel_list[:-1][skip_index] * (skip_index + 1) + x.shape[1]
    assert out.shape == (B, expected_c, H, W), out.shape
    assert len(subs) == skip_index + 1

    max_err = float(jnp.max(jnp.abs(out.astype(jnp.float32)
                                    - ref_out.astype(jnp.float32))))
    if not jnp.allclose(out.astype(jnp.float32), ref_out.astype(jnp.float32),
                        rtol=5e-2, atol=5e-2):
        raise AssertionError(f"Pallas kernel mismatch vs reference, max_err={max_err}")

    print("KERNEL_OK")
</pallas_src>

<mosaic_0001>
module attributes {stable_mosaic.version = 11 : i64} {
  func.func @_conv3x3_bn_relu_kernel(%arg0: i32, %arg1: i32, %arg2: memref<1x8x384xbf16, #tpu.memory_space<vmem>>, %arg3: memref<1x8x384xbf16, #tpu.memory_space<vmem>>, %arg4: memref<4x144xbf16, #tpu.memory_space<vmem>>, %arg5: memref<2x4x1xf32, #tpu.memory_space<vmem>>, %arg6: memref<1x4x256xbf16, #tpu.memory_space<vmem>>, %arg7: memref<144x256xbf16, #tpu.memory_space<vmem>>) attributes {dimension_semantics = [#tpu.dimension_semantics<parallel>, #tpu.dimension_semantics<parallel>], iteration_bounds = array<i64: 2, 1>, scalar_prefetch = 0 : i64, scratch_operands = 1 : i64, tpu.core_type = #tpu.core_type<tc>, window_params = [{transform_indices = @transform_0, window_bounds = array<i64: 1, 8, 384>}, {transform_indices = @transform_1, window_bounds = array<i64: 1, 8, 384>}, {pipeline_mode = #tpu.pipeline_mode<synchronous>, transform_indices = @transform_2, window_bounds = array<i64: 4, 144>}, {pipeline_mode = #tpu.pipeline_mode<synchronous>, transform_indices = @transform_3, window_bounds = array<i64: 2, 4, 1>}, {transform_indices = @transform_4, window_bounds = array<i64: 1, 4, 256>}]} {
    %c256_i32 = arith.constant 256 : i32
    %0 = arith.muli %arg1, %c256_i32 : i32
    %1 = tpu.assume_multiple %0, 128 : i32
    %2 = tpu.iota {dimensions = array<i32: 1>} : vector<1x288xi32>
    %3 = vector.broadcast %1 : i32 to vector<1x288xi32>
    %4 = arith.addi %2, %3 : vector<1x288xi32>
    %c16_i32 = arith.constant 16 : i32
    %c0_i32 = arith.constant 0 : i32
    %5 = arith.cmpi eq, %c16_i32, %c0_i32 : i32
    %c1_i32 = arith.constant 1 : i32
    %6 = arith.select %5, %c1_i32, %c16_i32 : i32
    %7 = vector.broadcast %6 : i32 to vector<1x288xi32>
    %8 = arith.remsi %4, %7 : vector<1x288xi32>
    %c0_i32_0 = arith.constant 0 : i32
    %9 = vector.broadcast %c0_i32_0 : i32 to vector<1x288xi32>
    %10 = arith.cmpi ne, %8, %9 : vector<1x288xi32>
    %c0_i32_1 = arith.constant 0 : i32
    %11 = vector.broadcast %c0_i32_1 : i32 to vector<1x288xi32>
    %12 = arith.cmpi slt, %8, %11 : vector<1x288xi32>
    %c0_i32_2 = arith.constant 0 : i32
    %13 = arith.cmpi slt, %6, %c0_i32_2 : i32
    %14 = vector.broadcast %13 : i1 to vector<1x288xi1>
    %15 = vector.broadcast %14 : vector<1x288xi1> to vector<1x288xi1>
    %16 = arith.xori %12, %15 : vector<1x288xi1>
    %17 = arith.andi %16, %10 : vector<1x288xi1>
    %18 = vector.broadcast %6 : i32 to vector<1x288xi32>
    %19 = arith.addi %8, %18 : vector<1x288xi32>
    %20 = arith.select %17, %19, %8 : vector<1x288xi1>, vector<1x288xi32>
    %c0_i32_3 = arith.constant 0 : i32
    %21 = vector.broadcast %c0_i32_3 : i32 to vector<1x288xi32>
    %22 = arith.cmpi ne, %20, %21 : vector<1x288xi32>
    %c15_i32 = arith.constant 15 : i32
    %23 = vector.broadcast %c15_i32 : i32 to vector<1x288xi32>
    %24 = arith.cmpi ne, %20, %23 : vector<1x288xi32>
    %c0 = arith.constant 0 : index
    %c0_4 = arith.constant 0 : index
    %25 = arith.index_cast %1 : i32 to index
    %26 = vector.load %arg2[%c0, %c0_4, %25] : memref<1x8x384xbf16, #tpu.memory_space<vmem>>, vector<1x8x290xbf16>
    %27 = vector.shape_cast %26 : vector<1x8x290xbf16> to vector<8x290xbf16>
    %28 = vector.extract_strided_slice %27 {offsets = [0, 0], sizes = [8, 288], strides = [1, 1]} : vector<8x290xbf16> to vector<8x288xbf16>
    %cst = arith.constant 0.000000e+00 : bf16
    %29 = vector.broadcast %cst : bf16 to vector<8x288xbf16>
    %30 = vector.shape_cast %22 : vector<1x288xi1> to vector<1x288xi1>
    %31 = vector.broadcast %30 : vector<1x288xi1> to vector<8x288xi1>
    %32 = arith.select %31, %28, %29 : vector<8x288xi1>, vector<8x288xbf16>
    %33 = vector.extract_strided_slice %32 {offsets = [0, 0], sizes = [8, 256], strides = [1, 1]} : vector<8x288xbf16> to vector<8x256xbf16>
    %c0_5 = arith.constant 0 : index
    %c0_6 = arith.constant 0 : index
    %34 = vector.load %arg7[%c0_5, %c0_6] : memref<144x256xbf16, #tpu.memory_space<vmem>>, vector<8x256xbf16>
    tpu.vector_store %arg7[%c0_5, %c0_6], %33 {strides = array<i32>} : memref<144x256xbf16, #tpu.memory_space<vmem>>, vector<8x256xbf16>,
    %35 = vector.extract_strided_slice %32 {offsets = [0, 16], sizes = [8, 256], strides = [1, 1]} : vector<8x288xbf16> to vector<8x256xbf16>
    %c48 = arith.constant 48 : index
    %c0_7 = arith.constant 0 : index
    %36 = vector.load %arg7[%c48, %c0_7] : memref<144x256xbf16, #tpu.memory_space<vmem>>, vector<8x256xbf16>
    tpu.vector_store %arg7[%c48, %c0_7], %35 {strides = array<i32>} : memref<144x256xbf16, #tpu.memory_space<vmem>>, vector<8x256xbf16>,
    %37 = vector.extract_strided_slice %32 {offsets = [0, 32], sizes = [8, 256], strides = [1, 1]} : vector<8x288xbf16> to vector<8x256xbf16>
    %c96 = arith.constant 96 : index
    %c0_8 = arith.constant 0 : index
    %38 = vector.load %arg7[%c96, %c0_8] : memref<144x256xbf16, #tpu.memory_space<vmem>>, vector<8x256xbf16>
    tpu.vector_store %arg7[%c96, %c0_8], %37 {strides = array<i32>} : memref<144x256xbf16, #tpu.memory_space<vmem>>, vector<8x256xbf16>,
    %39 = vector.extract_strided_slice %27 {offsets = [0, 1], sizes = [8, 288], strides = [1, 1]} : vector<8x290xbf16> to vector<8x288xbf16>
    %40 = vector.extract_strided_slice %39 {offsets = [0, 0], sizes = [8, 256], strides = [1, 1]} : vector<8x288xbf16> to vector<8x256xbf16>
    %c16 = arith.constant 16 : index
    %c0_9 = arith.constant 0 : index
    %41 = vector.load %arg7[%c16, %c0_9] : memref<144x256xbf16, #tpu.memory_space<vmem>>, vector<8x256xbf16>
    tpu.vector_store %arg7[%c16, %c0_9], %40 {strides = array<i32>} : memref<144x256xbf16, #tpu.memory_space<vmem>>, vector<8x256xbf16>,
    %42 = vector.extract_strided_slice %39 {offsets = [0, 16], sizes = [8, 256], strides = [1, 1]} : vector<8x288xbf16> to vector<8x256xbf16>
    %c64 = arith.constant 64 : index
    %c0_10 = arith.constant 0 : index
    %43 = vector.load %arg7[%c64, %c0_10] : memref<144x256xbf16, #tpu.memory_space<vmem>>, vector<8x256xbf16>
    tpu.vector_store %arg7[%c64, %c0_10], %42 {strides = array<i32>} : memref<144x256xbf16, #tpu.memory_space<vmem>>, vector<8x256xbf16>,
    %44 = vector.extract_strided_slice %39 {offsets = [0, 32], sizes = [8, 256], strides = [1, 1]} : vector<8x288xbf16> to vector<8x256xbf16>
    %c112 = arith.constant 112 : index
    %c0_11 = arith.constant 0 : index
    %45 = vector.load %arg7[%c112, %c0_11] : memref<144x256xbf16, #tpu.memory_space<vmem>>, vector<8x256xbf16>
    tpu.vector_store %arg7[%c112, %c0_11], %44 {strides = array<i32>} : memref<144x256xbf16, #tpu.memory_space<vmem>>, vector<8x256xbf16>,
    %46 = vector.extract_strided_slice %27 {offsets = [0, 2], sizes = [8, 288], strides = [1, 1]} : vector<8x290xbf16> to vector<8x288xbf16>
    %cst_12 = arith.constant 0.000000e+00 : bf16
    %47 = vector.broadcast %cst_12 : bf16 to vector<8x288xbf16>
    %48 = vector.shape_cast %24 : vector<1x288xi1> to vector<1x288xi1>
    %49 = vector.broadcast %48 : vector<1x288xi1> to vector<8x288xi1>
    %50 = arith.select %49, %46, %47 : vector<8x288xi1>, vector<8x288xbf16>
    %51 = vector.extract_strided_slice %50 {offsets = [0, 0], sizes = [8, 256], strides = [1, 1]} : vector<8x288xbf16> to vector<8x256xbf16>
    %c32 = arith.constant 32 : index
    %c0_13 = arith.constant 0 : index
    %52 = vector.load %arg7[%c32, %c0_13] : memref<144x256xbf16, #tpu.memory_space<vmem>>, vector<8x256xbf16>
    tpu.vector_store %arg7[%c32, %c0_13], %51 {strides = array<i32>} : memref<144x256xbf16, #tpu.memory_space<vmem>>, vector<8x256xbf16>,
    %53 = vector.extract_strided_slice %50 {offsets = [0, 16], sizes = [8, 256], strides = [1, 1]} : vector<8x288xbf16> to vector<8x256xbf16>
    %c80 = arith.constant 80 : index
    %c0_14 = arith.constant 0 : index
    %54 = vector.load %arg7[%c80, %c0_14] : memref<144x256xbf16, #tpu.memory_space<vmem>>, vector<8x256xbf16>
    tpu.vector_store %arg7[%c80, %c0_14], %53 {strides = array<i32>} : memref<144x256xbf16, #tpu.memory_space<vmem>>, vector<8x256xbf16>,
    %55 = vector.extract_strided_slice %50 {offsets = [0, 32], sizes = [8, 256], strides = [1, 1]} : vector<8x288xbf16> to vector<8x256xbf16>
    %c128 = arith.constant 128 : index
    %c0_15 = arith.constant 0 : index
    %56 = vector.load %arg7[%c128, %c0_15] : memref<144x256xbf16, #tpu.memory_space<vmem>>, vector<8x256xbf16>
    tpu.vector_store %arg7[%c128, %c0_15], %55 {strides = array<i32>} : memref<144x256xbf16, #tpu.memory_space<vmem>>, vector<8x256xbf16>,
    %c0_16 = arith.constant 0 : index
    %c0_17 = arith.constant 0 : index
    %57 = arith.index_cast %1 : i32 to index
    %58 = vector.load %arg3[%c0_16, %c0_17, %57] : memref<1x8x384xbf16, #tpu.memory_space<vmem>>, vector<1x8x290xbf16>
    %59 = vector.shape_cast %58 : vector<1x8x290xbf16> to vector<8x290xbf16>
    %60 = vector.extract_strided_slice %59 {offsets = [0, 0], sizes = [8, 288], strides = [1, 1]} : vector<8x290xbf16> to vector<8x288xbf16>
    %cst_18 = arith.constant 0.000000e+00 : bf16
    %61 = vector.broadcast %cst_18 : bf16 to vector<8x288xbf16>
    %62 = vector.shape_cast %22 : vector<1x288xi1> to vector<1x288xi1>
    %63 = vector.broadcast %62 : vector<1x288xi1> to vector<8x288xi1>
    %64 = arith.select %63, %60, %61 : vector<8x288xi1>, vector<8x288xbf16>
    %65 = vector.extract_strided_slice %64 {offsets = [0, 0], sizes = [8, 256], strides = [1, 1]} : vector<8x288xbf16> to vector<8x256xbf16>
    %c8 = arith.constant 8 : index
    %c0_19 = arith.constant 0 : index
    %66 = vector.load %arg7[%c8, %c0_19] : memref<144x256xbf16, #tpu.memory_space<vmem>>, vector<8x256xbf16>
    tpu.vector_store %arg7[%c8, %c0_19], %65 {strides = array<i32>} : memref<144x256xbf16, #tpu.memory_space<vmem>>, vector<8x256xbf16>,
    %67 = vector.extract_strided_slice %64 {offsets = [0, 16], sizes = [8, 256], strides = [1, 1]} : vector<8x288xbf16> to vector<8x256xbf16>
    %c56 = arith.constant 56 : index
    %c0_20 = arith.constant 0 : index
    %68 = vector.load %arg7[%c56, %c0_20] : memref<144x256xbf16, #tpu.memory_space<vmem>>, vector<8x256xbf16>
    tpu.vector_store %arg7[%c56, %c0_20], %67 {strides = array<i32>} : memref<144x256xbf16, #tpu.memory_space<vmem>>, vector<8x256xbf16>,
    %69 = vector.extract_strided_slice %64 {offsets = [0, 32], sizes = [8, 256], strides = [1, 1]} : vector<8x288xbf16> to vector<8x256xbf16>
    %c104 = arith.constant 104 : index
    %c0_21 = arith.constant 0 : index
    %70 = vector.load %arg7[%c104, %c0_21] : memref<144x256xbf16, #tpu.memory_space<vmem>>, vector<8x256xbf16>
    tpu.vector_store %arg7[%c104, %c0_21], %69 {strides = array<i32>} : memref<144x256xbf16, #tpu.memory_space<vmem>>, vector<8x256xbf16>,
    %71 = vector.extract_strided_slice %59 {offsets = [0, 1], sizes = [8, 288], strides = [1, 1]} : vector<8x290xbf16> to vector<8x288xbf16>
    %72 = vector.extract_strided_slice %71 {offsets = [0, 0], sizes = [8, 256], strides = [1, 1]} : vector<8x288xbf16> to vector<8x256xbf16>
    %c24 = arith.constant 24 : index
    %c0_22 = arith.constant 0 : index
    %73 = vector.load %arg7[%c24, %c0_22] : memref<144x256xbf16, #tpu.memory_space<vmem>>, vector<8x256xbf16>
    tpu.vector_store %arg7[%c24, %c0_22], %72 {strides = array<i32>} : memref<144x256xbf16, #tpu.memory_space<vmem>>, vector<8x256xbf16>,
    %74 = vector.extract_strided_slice %71 {offsets = [0, 16], sizes = [8, 256], strides = [1, 1]} : vector<8x288xbf16> to vector<8x256xbf16>
    %c72 = arith.constant 72 : index
    %c0_23 = arith.constant 0 : index
    %75 = vector.load %arg7[%c72, %c0_23] : memref<144x256xbf16, #tpu.memory_space<vmem>>, vector<8x256xbf16>
    tpu.vector_store %arg7[%c72, %c0_23], %74 {strides = array<i32>} : memref<144x256xbf16, #tpu.memory_space<vmem>>, vector<8x256xbf16>,
    %76 = vector.extract_strided_slice %71 {offsets = [0, 32], sizes = [8, 256], strides = [1, 1]} : vector<8x288xbf16> to vector<8x256xbf16>
    %c120 = arith.constant 120 : index
    %c0_24 = arith.constant 0 : index
    %77 = vector.load %arg7[%c120, %c0_24] : memref<144x256xbf16, #tpu.memory_space<vmem>>, vector<8x256xbf16>
    tpu.vector_store %arg7[%c120, %c0_24], %76 {strides = array<i32>} : memref<144x256xbf16, #tpu.memory_space<vmem>>, vector<8x256xbf16>,
    %78 = vector.extract_strided_slice %59 {offsets = [0, 2], sizes = [8, 288], strides = [1, 1]} : vector<8x290xbf16> to vector<8x288xbf16>
    %cst_25 = arith.constant 0.000000e+00 : bf16
    %79 = vector.broadcast %cst_25 : bf16 to vector<8x288xbf16>
    %80 = vector.shape_cast %24 : vector<1x288xi1> to vector<1x288xi1>
    %81 = vector.broadcast %80 : vector<1x288xi1> to vector<8x288xi1>
    %82 = arith.select %81, %78, %79 : vector<8x288xi1>, vector<8x288xbf16>
    %83 = vector.extract_strided_slice %82 {offsets = [0, 0], sizes = [8, 256], strides = [1, 1]} : vector<8x288xbf16> to vector<8x256xbf16>
    %c40 = arith.constant 40 : index
    %c0_26 = arith.constant 0 : index
    %84 = vector.load %arg7[%c40, %c0_26] : memref<144x256xbf16, #tpu.memory_space<vmem>>, vector<8x256xbf16>
    tpu.vector_store %arg7[%c40, %c0_26], %83 {strides = array<i32>} : memref<144x256xbf16, #tpu.memory_space<vmem>>, vector<8x256xbf16>,
    %85 = vector.extract_strided_slice %82 {offsets = [0, 16], sizes = [8, 256], strides = [1, 1]} : vector<8x288xbf16> to vector<8x256xbf16>
    %c88 = arith.constant 88 : index
    %c0_27 = arith.constant 0 : index
    %86 = vector.load %arg7[%c88, %c0_27] : memref<144x256xbf16, #tpu.memory_space<vmem>>, vector<8x256xbf16>
    tpu.vector_store %arg7[%c88, %c0_27], %85 {strides = array<i32>} : memref<144x256xbf16, #tpu.memory_space<vmem>>, vector<8x256xbf16>,
    %87 = vector.extract_strided_slice %82 {offsets = [0, 32], sizes = [8, 256], strides = [1, 1]} : vector<8x288xbf16> to vector<8x256xbf16>
    %c136 = arith.constant 136 : index
    %c0_28 = arith.constant 0 : index
    %88 = vector.load %arg7[%c136, %c0_28] : memref<144x256xbf16, #tpu.memory_space<vmem>>, vector<8x256xbf16>
    tpu.vector_store %arg7[%c136, %c0_28], %87 {strides = array<i32>} : memref<144x256xbf16, #tpu.memory_space<vmem>>, vector<8x256xbf16>,
    %c0_29 = arith.constant 0 : index
    %c0_30 = arith.constant 0 : index
    %89 = vector.load %arg4[%c0_29, %c0_30] : memref<4x144xbf16, #tpu.memory_space<vmem>>, vector<4x144xbf16>
    %c0_31 = arith.constant 0 : index
    %c0_32 = arith.constant 0 : index
    %90 = vector.load %arg7[%c0_31, %c0_32] : memref<144x256xbf16, #tpu.memory_space<vmem>>, vector<144x256xbf16>
    %cst_33 = arith.constant dense<0.000000e+00> : vector<4x256xf32>
    %91 = tpu.matmul %89, %90, %cst_33 {dimension_numbers = #tpu.dot_dimension_numbers<[1], [0], [0], [1], [0, 0, 1, 1], [], []>} : vector<4x144xbf16>, vector<144x256xbf16>, vector<4x256xf32> -> vector<4x256xf32>
    %c0_34 = arith.constant 0 : index
    %c0_35 = arith.constant 0 : index
    %c0_36 = arith.constant 0 : index
    %92 = vector.load %arg5[%c0_34, %c0_35, %c0_36] : memref<2x4x1xf32, #tpu.memory_space<vmem>>, vector<1x4x1xf32>
    %93 = vector.shape_cast %92 : vector<1x4x1xf32> to vector<4x1xf32>
    %94 = vector.broadcast %93 : vector<4x1xf32> to vector<4x256xf32>
    %95 = arith.mulf %91, %94 : vector<4x256xf32>
    %c1 = arith.constant 1 : index
    %c0_37 = arith.constant 0 : index
    %c0_38 = arith.constant 0 : index
    %96 = vector.load %arg5[%c1, %c0_37, %c0_38] : memref<2x4x1xf32, #tpu.memory_space<vmem>>, vector<1x4x1xf32>
    %97 = vector.shape_cast %96 : vector<1x4x1xf32> to vector<4x1xf32>
    %98 = vector.broadcast %97 : vector<4x1xf32> to vector<4x256xf32>
    %99 = arith.addf %95, %98 : vector<4x256xf32>
    %cst_39 = arith.constant 0.000000e+00 : f32
    %100 = vector.broadcast %cst_39 : f32 to vector<4x256xf32>
    %101 = arith.maximumf %99, %100 : vector<4x256xf32>
    %102 = arith.truncf %101 : vector<4x256xf32> to vector<4x256xbf16>
    %c0_40 = arith.constant 0 : index
    %c0_41 = arith.constant 0 : index
    %c0_42 = arith.constant 0 : index
    %103 = vector.load %arg6[%c0_40, %c0_41, %c0_42] : memref<1x4x256xbf16, #tpu.memory_space<vmem>>, vector<1x4x256xbf16>
    %104 = vector.shape_cast %103 : vector<1x4x256xbf16> to vector<4x256xbf16>
    %105 = vector.shape_cast %102 : vector<4x256xbf16> to vector<1x4x256xbf16>
    tpu.vector_store %arg6[%c0_40, %c0_41, %c0_42], %105 {strides = array<i32>} : memref<1x4x256xbf16, #tpu.memory_space<vmem>>, vector<1x4x256xbf16>,
    return
  }
  func.func @transform_0(%arg0: i32, %arg1: i32) -> (i32, i32, i32) {
    %c0_i32 = arith.constant 0 : i32
    %c0_i32_0 = arith.constant 0 : i32
    %c0_i32_1 = arith.constant 0 : i32
    return %arg0, %c0_i32, %c0_i32_0 : i32, i32, i32
  }
  func.func @transform_1(%arg0: i32, %arg1: i32) -> (i32, i32, i32) {
    %c0_i32 = arith.constant 0 : i32
    %c0_i32_0 = arith.constant 0 : i32
    %c0_i32_1 = arith.constant 0 : i32
    return %arg0, %c0_i32, %c0_i32_0 : i32, i32, i32
  }
  func.func @transform_2(%arg0: i32, %arg1: i32) -> (i32, i32) {
    %c0_i32 = arith.constant 0 : i32
    %c0_i32_0 = arith.constant 0 : i32
    %c0_i32_1 = arith.constant 0 : i32
    return %c0_i32, %c0_i32_0 : i32, i32
  }
  func.func @transform_3(%arg0: i32, %arg1: i32) -> (i32, i32, i32) {
    %c0_i32 = arith.constant 0 : i32
    %c0_i32_0 = arith.constant 0 : i32
    %c0_i32_1 = arith.constant 0 : i32
    %c0_i32_2 = arith.constant 0 : i32
    return %c0_i32, %c0_i32_0, %c0_i32_1 : i32, i32, i32
  }
  func.func @transform_4(%arg0: i32, %arg1: i32) -> (i32, i32, i32) {
    %c0_i32 = arith.constant 0 : i32
    %c0_i32_0 = arith.constant 0 : i32
    return %arg0, %c0_i32, %arg1 : i32, i32, i32
  }
}

</mosaic_0001>

<llo_original>
// kernel: tpu_custom_call.1
$region0: #{tpu_custom_call.1}
  #allocation0 [shape = 'u32[]', space=smem, size = 0x4, offset = 0x4, fixed_abs, tag = 'smem constant byte address 0x4 - core index']
  #allocation1 [shape = 'u32[144,128]{1,0:T(1,128)}', space=vmem, size = 0x12000, scoped, tag = 'internal scratch']
  #allocation2 [shape = 'bf16[144,256]{1,0:T(16,128)(2,1)}', space=vmem, size = 0x12000, scoped, tag = 'scratch operand']
  %s0 = inlined_call_operand.hbm [shape: bf16[2,8,384], index: 0, kind: input, shape index: {}]
  %s1 = inlined_call_operand.hbm [shape: bf16[2,8,384], index: 1, kind: input, shape index: {}]
  %s2 = inlined_call_operand.vmem [shape: bf16[4,144], index: 2, kind: input, shape index: {}]
  %s3 = inlined_call_operand.vmem [shape: f32[2,4,1], index: 3, kind: input, shape index: {}]
  %s4 = inlined_call_operand.hbm [shape: bf16[2,4,256], index: 4, kind: output, shape index: {}]
  %s5 = sld [smem:[#allocation0]]
  $region57: #{tpu_custom_call.1} parent=0
    _
  %s7 = ssub.s32 1, %s5
  %s8 = scalar_select 0, %s7, %s5
  $region1: #{tpu_custom_call.1} parent=0
    #allocation3 [shape = 'u8[12288]{0}', space=vmem, size = 0x3000, scoped, tag = 'input window, operand 0']
    #allocation4 [shape = 's32[2]{0}', space=sflag, size = 0x8, scoped, tag = 'scoped memory for tpu_custom_call.1']
    #allocation5 [shape = 's32[2]{0}', space=sflag, size = 0x8, scoped, tag = 'scoped memory for tpu_custom_call.1']
    #allocation6 [shape = 'u8[12288]{0}', space=vmem, size = 0x3000, scoped, tag = 'input window, operand 1']
    #allocation7 [shape = 's32[2]{0}', space=sflag, size = 0x8, scoped, tag = 'scoped memory for tpu_custom_call.1']
    #allocation8 [shape = 'u8[4096]{0}', space=vmem, size = 0x1000, scoped, tag = 'output window, operand 0']
    %9 = vsyncpa [#allocation4], 0
    %s10 = scalar_lea.sflag [#allocation4], 1
    %11 = vsyncpa %s10, 0
    %12 = vsyncpa [#allocation7], 0
    %s13 = scalar_lea.sflag [#allocation7], 1
    %14 = vsyncpa %s13, 0
    %15 = vsyncpa [#allocation5], 0
    %s16 = scalar_lea.sflag [#allocation5], 1
    %17 = vsyncpa %s16, 0
    loop: start=0, step=1, limit=4
    $region2: #{tpu_custom_call.1} parent=1 // loop_pre_header
      _
    $region3: #{tpu_custom_call.1} parent=1 // loop_header
      %s19 = sphi 0, %s23
      %p20 = scmp.ge.s32.totalorder %s19, 4
      %s26 = sphi 0, %s38
      %s27 = sphi 0, %s34
      %s28 = sphi 0, %s26
      %s29 = sphi 0, %s27
      %s30 = sphi 0, %s28
      %s31 = sphi 0, %s29
      %s41 = sphi 0, %s43
      %s44 = sphi 0, %s41
      %s45 = sphi 0, %s44
      %s61 = sphi 0, %s45
      %s67 = sphi 0, %s69
      %s70 = sphi 0, %s67
      %s71 = sphi 0, %s70
      %s87 = sphi 0, %s71
      %s91 = sphi 0, %s91
      %s93 = sphi 0, %s91
      %s94 = sphi 0, %s93
      %s108 = sphi 0, %s94
      %s112 = sphi 0, %s112
      %s114 = sphi 0, %s112
      %s115 = sphi 0, %s114
      %s129 = sphi 0, %s115
      %s137 = sphi 0, %s139
      %s140 = sphi 0, %s137
      %s141 = sphi 0, %s140
      %s157 = sphi 0, %s141
    $region4: #{tpu_custom_call.1} parent=1 // loop_header_branch
      %22 = sbr.rel (%p20) target = $region8
    $region5: #{tpu_custom_call.1} parent=1 // loop_body
      %s24 = ssub.s32 %s19, 1
      %s25 = ssub.s32 %s19, 2
      %s32 = sadd.s32 1, %s27
      %p33 = scmp.ge.s32.totalorder %s32, 1
      %s34 = scalar_select %p33, 0, %s32
      %s35 = sadd.s32 1, %s26
      %s36 = scalar_select %p33, %s35, %s26
      %p37 = scmp.ge.s32.totalorder %s36, 2
      %s38 = scalar_select %p37, 0, %s36
      %s39 = ssub.s32 %s26, %s38
      %p40 = scmp.eq.s32.totalorder %s39, 0
      %s42 = sadd.s32 %s41, 1
      %s43 = scalar_select %p40, %s41, %s42
      %p46 = pneg %p40
      %p47 = scmp.eq.s32.totalorder %s19, 1
      %p48 = por %p46, %p47
      %p49 = scmp.ne.s32.totalorder %s41, %s44
      %p50 = scmp.eq.s32.totalorder %s19, 0
      %p51 = por %p49, %p50
      %p52 = scmp.ne.s32.totalorder %s41, %s44
      %p53 = scmp.eq.s32.totalorder %s24, 1
      %p54 = por %p52, %p53
      %p55 = scmp.ne.s32.totalorder %s44, %s45
      %p56 = scmp.eq.s32.totalorder %s24, 0
      %p57 = por %p55, %p56
      %p58 = scmp.ne.s32.totalorder %s44, %s45
      %p59 = scmp.eq.s32.totalorder %s25, 1
      %p60 = por %p58, %p59
      %p62 = scmp.ne.s32.totalorder %s45, %s61
      %p63 = scmp.eq.s32.totalorder %s25, 0
      %p64 = por %p62, %p63
      %s65 = ssub.s32 %s26, %s38
      %p66 = scmp.eq.s32.totalorder %s65, 0
      %s68 = sadd.s32 %s67, 1
      %s69 = scalar_select %p66, %s67, %s68
      %p72 = pneg %p66
      %p73 = scmp.eq.s32.totalorder %s19, 1
      %p74 = por %p72, %p73
      %p75 = scmp.ne.s32.totalorder %s67, %s70
      %p76 = scmp.eq.s32.totalorder %s19, 0
      %p77 = por %p75, %p76
      %p78 = scmp.ne.s32.totalorder %s67, %s70
      %p79 = scmp.eq.s32.totalorder %s24, 1
      %p80 = por %p78, %p79
      %p81 = scmp.ne.s32.totalorder %s70, %s71
      %p82 = scmp.eq.s32.totalorder %s24, 0
      %p83 = por %p81, %p82
      %p84 = scmp.ne.s32.totalorder %s70, %s71
      %p85 = scmp.eq.s32.totalorder %s25, 1
      %p86 = por %p84, %p85
      %p88 = scmp.ne.s32.totalorder %s71, %s87
      %p89 = scmp.eq.s32.totalorder %s25, 0
      %p90 = por %p88, %p89
      %s92 = sadd.s32 %s91, 1
      %p95 = scmp.eq.s32.totalorder %s19, 1
      %p96 = scmp.ne.s32.totalorder %s91, %s93
      %p97 = scmp.eq.s32.totalorder %s19, 0
      %p98 = por %p96, %p97
      %p99 = scmp.ne.s32.totalorder %s91, %s93
      %p100 = scmp.eq.s32.totalorder %s24, 1
      %p101 = por %p99, %p100
      %p102 = scmp.ne.s32.totalorder %s93, %s94
      %p103 = scmp.eq.s32.totalorder %s24, 0
      %p104 = por %p102, %p103
      %p105 = scmp.ne.s32.totalorder %s93, %s94
      %p106 = scmp.eq.s32.totalorder %s25, 1
      %p107 = por %p105, %p106
      %p109 = scmp.ne.s32.totalorder %s94, %s108
      %p110 = scmp.eq.s32.totalorder %s25, 0
      %p111 = por %p109, %p110
      %s113 = sadd.s32 %s112, 1
      %p116 = scmp.eq.s32.totalorder %s19, 1
      %p117 = scmp.ne.s32.totalorder %s112, %s114
      %p118 = scmp.eq.s32.totalorder %s19, 0
      %p119 = por %p117, %p118
      %p120 = scmp.ne.s32.totalorder %s112, %s114
      %p121 = scmp.eq.s32.totalorder %s24, 1
      %p122 = por %p120, %p121
      %p123 = scmp.ne.s32.totalorder %s114, %s115
      %p124 = scmp.eq.s32.totalorder %s24, 0
      %p125 = por %p123, %p124
      %p126 = scmp.ne.s32.totalorder %s114, %s115
      %p127 = scmp.eq.s32.totalorder %s25, 1
      %p128 = por %p126, %p127
      %p130 = scmp.ne.s32.totalorder %s115, %s129
      %p131 = scmp.eq.s32.totalorder %s25, 0
      %p132 = por %p130, %p131
      %s133 = ssub.s32 %s26, %s38
      %s134 = ssub.s32 %s27, %s34
      %s135 = sor.u32 %s133, %s134
      %p136 = scmp.eq.s32.totalorder %s135, 0
      %s138 = sadd.s32 %s137, 1
      %s139 = scalar_select %p136, %s137, %s138
      %p142 = pneg %p136
      %p143 = scmp.eq.s32.totalorder %s19, 1
      %p144 = por %p142, %p143
      %p145 = scmp.ne.s32.totalorder %s137, %s140
      %p146 = scmp.eq.s32.totalorder %s19, 0
      %p147 = por %p145, %p146
      %p148 = scmp.ne.s32.totalorder %s137, %s140
      %p149 = scmp.eq.s32.totalorder %s24, 1
      %p150 = por %p148, %p149
      %p151 = scmp.ne.s32.totalorder %s140, %s141
      %p152 = scmp.eq.s32.totalorder %s24, 0
      %p153 = por %p151, %p152
      %p154 = scmp.ne.s32.totalorder %s140, %s141
      %p155 = scmp.eq.s32.totalorder %s25, 1
      %p156 = por %p154, %p155
      %p158 = scmp.ne.s32.totalorder %s141, %s157
      %p159 = scmp.eq.s32.totalorder %s25, 0
      %p160 = por %p158, %p159
      %p161 = scmp.le.s32.totalorder 1, %s19
      %p162 = scmp.lt.s32.totalorder %s19, 3
      %p163 = pnand %p161, %p162
      %p164 = pneg %p163
      // Predicated region
      $region9: #{tpu_custom_call.1} parent=5 // pred_check
        _
      $region10: #{tpu_custom_call.1} parent=5 // pred_check_branch
        %166 = sbr.rel (%p163) target = $region12
      $region11: #{tpu_custom_call.1} parent=5 // pred_region
        %s167 = ssub.s32 %s19, 1
        // Predicated region
        $region13: #{tpu_custom_call.1} parent=11 // pred_check
          %p168 = pneg %p104
        $region14: #{tpu_custom_call.1} parent=11 // pred_check_branch
          %170 = sbr.rel (%p168) target = $region16
        $region15: #{tpu_custom_call.1} parent=11 // pred_region
          _
        $region16: #{tpu_custom_call.1} parent=11 // pred_fallthru
          _
        // Predicated region
        $region17: #{tpu_custom_call.1} parent=11 // pred_check
          %p171 = pneg %p125
        $region18: #{tpu_custom_call.1} parent=11 // pred_check_branch
          %173 = sbr.rel (%p171) target = $region20
        $region19: #{tpu_custom_call.1} parent=11 // pred_region
          _
        $region20: #{tpu_custom_call.1} parent=11 // pred_fallthru
          _
      $region12: #{tpu_custom_call.1} parent=5 // pred_fallthru
        _
      %p174 = scmp.lt.s32.totalorder %s19, 2
      // Predicated region
      $region21: #{tpu_custom_call.1} parent=5 // pred_check
        %p175 = pneg %p174
      $region22: #{tpu_custom_call.1} parent=5 // pred_check_branch
        %177 = sbr.rel (%p175) target = $region24
      $region23: #{tpu_custom_call.1} parent=5 // pred_region
        // Predicated region
        $region25: #{tpu_custom_call.1} parent=23 // pred_check
          %p178 = pneg %p51
        $region26: #{tpu_custom_call.1} parent=23 // pred_check_branch
          %180 = sbr.rel (%p178) target = $region28
        $region27: #{tpu_custom_call.1} parent=23 // pred_region
          %s181 = sand.u32 %s41, 1
          %s182 = scalar_lea.sflag [#allocation4], %s181
          %s183 = sand.u32 %s41, 1
          %s184 = smul.addr %s183, 12
          %s185 = scalar_lea.vmem [#allocation3], %s184
          %s187 = ssub.s32 192, 192
          %188 = vsyncadd %s182, %s187
          %s189 = smul.addr %s26, 3
          %s190 = smul.addr %s189, 64
          %s191 = scalar_lea.hbm %s0, %s190
          %s193 = sshll.u32 %s185, 4
          %s194 = int_to_ptr.vmem [resolvable:$true] %s193
          %196 = dma.hbm_to_vmem [thread:$0]  %s191, 192, %s194, %s182
        $region28: #{tpu_custom_call.1} parent=23 // pred_fallthru
          _
        // Predicated region
        $region29: #{tpu_custom_call.1} parent=23 // pred_check
          %p197 = pneg %p77
        $region30: #{tpu_custom_call.1} parent=23 // pred_check_branch
          %199 = sbr.rel (%p197) target = $region32
        $region31: #{tpu_custom_call.1} parent=23 // pred_region
          %s200 = sand.u32 %s67, 1
          %s201 = scalar_lea.sflag [#allocation7], %s200
          %s202 = sand.u32 %s67, 1
          %s203 = smul.addr %s202, 12
          %s204 = scalar_lea.vmem [#allocation6], %s203
          %s206 = ssub.s32 192, 192
          %207 = vsyncadd %s201, %s206
          %s208 = smul.addr %s26, 3
          %s209 = smul.addr %s208, 64
          %s210 = scalar_lea.hbm %s1, %s209
          %s212 = sshll.u32 %s204, 4
          %s213 = int_to_ptr.vmem [resolvable:$true] %s212
          %215 = dma.hbm_to_vmem [thread:$0]  %s210, 192, %s213, %s201
        $region32: #{tpu_custom_call.1} parent=23 // pred_fallthru
          _
      $region24: #{tpu_custom_call.1} parent=5 // pred_fallthru
        _
      %p216 = scmp.le.s32.totalorder 1, %s19
      %p217 = scmp.lt.s32.totalorder %s19, 3
      %p218 = pnand %p216, %p217
      %p219 = pneg %p218
      // Predicated region
      $region33: #{tpu_custom_call.1} parent=5 // pred_check
        _
      $region34: #{tpu_custom_call.1} parent=5 // pred_check_branch
        %221 = sbr.rel (%p218) target = $region36
      $region35: #{tpu_custom_call.1} parent=5 // pred_region
        %s222 = ssub.s32 %s19, 1
        %s223 = sand.u32 %s44, 1
        %s224 = scalar_lea.sflag [#allocation4], %s223
        %s225 = sand.u32 %s44, 1
        %s226 = smul.addr %s225, 12
        %s227 = scalar_lea.vmem [#allocation3], %s226
        // Predicated region
        $region37: #{tpu_custom_call.1} parent=35 // pred_check
          %p228 = pneg %p57
        $region38: #{tpu_custom_call.1} parent=35 // pred_check_branch
          %230 = sbr.rel (%p228) target = $region40
        $region39: #{tpu_custom_call.1} parent=35 // pred_region
          %231 = dma.done %s224, 192
        $region40: #{tpu_custom_call.1} parent=35 // pred_fallthru
          _
        %s232 = sand.u32 %s70, 1
        %s233 = scalar_lea.sflag [#allocation7], %s232
        %s234 = sand.u32 %s70, 1
        %s235 = smul.addr %s234, 12
        %s236 = scalar_lea.vmem [#allocation6], %s235
        // Predicated region
        $region41: #{tpu_custom_call.1} parent=35 // pred_check
          %p237 = pneg %p83
        $region42: #{tpu_custom_call.1} parent=35 // pred_check_branch
          %239 = sbr.rel (%p237) target = $region44
        $region43: #{tpu_custom_call.1} parent=35 // pred_region
          %240 = dma.done %s233, 192
        $region44: #{tpu_custom_call.1} parent=35 // pred_fallthru
          _
        %s241 = sand.u32 %s44, 1
        %s242 = scalar_lea.sflag [#allocation4], %s241
        %s243 = sand.u32 %s44, 1
        %s244 = smul.addr %s243, 12
        %s245 = scalar_lea.vmem [#allocation3], %s244
        %p246 = pneg %p57
        %p247 = pneg %p54
        %s248 = sand.u32 %s70, 1
        %s249 = scalar_lea.sflag [#allocation7], %s248
        %s250 = sand.u32 %s70, 1
        %s251 = smul.addr %s250, 12
        %s252 = scalar_lea.vmem [#allocation6], %s251
        %p253 = pneg %p83
        %p254 = pneg %p80
        %p255 = pneg %p104
        %p256 = pneg %p101
        %p257 = pneg %p125
        %p258 = pneg %p122
        %p259 = pneg %p153
        %p260 = pneg %p150
        %s261 = sand.u32 %s140, 1
        %s262 = scalar_lea.sflag [#allocation5], %s261
        %s263 = sand.u32 %s140, 1
        %s264 = smul.addr %s263, 4
        %s265 = scalar_lea.vmem [#allocation8], %s264
        %s266 = smul.u32 2, %s29
        %s270 = smul.u32 %s29, 256
        %v271 = vlaneseq
        %v272 = vand.u32 %v271, 127
        %v273 = vadd.s32 %v272, 128
        %v274 = vadd.s32 %v272, 256
        %v275 = vstv %s270
        %v276 = vadd.s32 %v272, %v275
        %v277 = vadd.s32 %v273, %v275
        %v278 = vadd.s32 %v274, %v275
        %vm279 = vcmp.lt.s32.totalorder %v276, 0
        %v280 = vsub.s32 0, %v276
        %v281 = vsel %vm279, %v280, %v276
        %v282 = vshrl.u32 %v281, 4
        %v283 = vand.u32 %v281, 15
        %v284 = vsub.s32 0, %v283
        %v285 = vsel %vm279, %v284, %v283
        %vm286 = vcmp.lt.s32.totalorder %v277, 0
        %v287 = vsub.s32 0, %v277
        %v288 = vsel %vm286, %v287, %v277
        %v289 = vshrl.u32 %v288, 4
        %v290 = vand.u32 %v288, 15
        %v291 = vsub.s32 0, %v290
        %v292 = vsel %vm286, %v291, %v290
        %vm293 = vcmp.lt.s32.totalorder %v278, 0
        %v294 = vsub.s32 0, %v278
        %v295 = vsel %vm293, %v294, %v278
        %v296 = vshrl.u32 %v295, 4
        %v297 = vand.u32 %v295, 15
        %v298 = vsub.s32 0, %v297
        %v299 = vsel %vm293, %v298, %v297
        %vm300 = vcmp.ne.s32.totalorder %v285, 0
        %vm301 = vcmp.ne.s32.totalorder %v292, 0
        %vm302 = vcmp.ne.s32.totalorder %v299, 0
        %vm303 = vcmp.lt.s32.totalorder %v285, 0
        %vm304 = vcmp.lt.s32.totalorder %v292, 0
        %vm305 = vcmp.lt.s32.totalorder %v299, 0
        %vm306 = vmand %vm303, %vm300
        %vm307 = vmand %vm304, %vm301
        %vm308 = vmand %vm305, %vm302
        %v309 = vadd.s32 %v285, 16
        %v310 = vadd.s32 %v292, 16
        %v311 = vadd.s32 %v299, 16
        %v312 = vsel %vm306, %v309, %v285
        %v313 = vsel %vm307, %v310, %v292
        %v314 = vsel %vm308, %v311, %v299
        %vm315 = vcmp.ne.s32.totalorder %v312, 0
        %vm316 = vcmp.ne.s32.totalorder %v313, 0
        %vm317 = vcmp.ne.s32.totalorder %v314, 0
        %vm318 = vcmp.ne.s32.totalorder %v312, 15
        %vm319 = vcmp.ne.s32.totalorder %v313, 15
        %vm320 = vcmp.ne.s32.totalorder %v314, 15
        %s321 = sshra.s32 %s270, 7
        %s322 = sand.u32 %s270, 127
        %s323 = smul.addr %s321, 4
        %s324 = scalar_lea.vmem %s227, %s323 [#allocation3]
        %v325 = vld [vmem:[%s324] sm:$0xff]
        %v326 = vld [vmem:[%s324 + $0x8] sm:$0xf]
        %v327 = vsel %vm315, 1, 0
        %v328 = vsel %vm316, 1, 0
        %v329 = vsel %vm317, 1, 0
        %vm330 = vcmp.eq.s32.totalorder %v327, 1
        %vm331 = vcmp.eq.s32.totalorder %v328, 1
        %vm332 = vcmp.eq.s32.totalorder %v329, 1
        %vm333 = vmpackc.low %vm331, %vm330
        %vm334 = vmpackc.low %vm332, %vm332
        %v335 = vsel %vm333, %v325, 0
        %v336 = vsel %vm334, %v326, 0
        %v338 = vunpack.c.l.b16 %v335
        %v339 = vunpack.c.h.b16 %v335
        %v340 = vpack.c.b16 %v338, %v338
        %v341 = vpack.c.b16 %v339, %v339
        %344 = vst [vmem:[#allocation2] sm:$0xf] %v340
        %345 = vst [vmem:[#allocation2 + $0x8] sm:$0xf] %v341
        %v347 = vunpack.c.l.b16 %v336
        %v348 = vpack.c.b16 %v347, %v347
        %349 = vrot.lane.b32.xlu0 %v340, 112
        %v350 = vpop.permute.xlu0 %349
        %351 = vrot.lane.b32.xlu0 %v341, 112
        %v352 = vpop.permute.xlu0 %351
        %353 = vrot.lane.b32.xlu0 %v348, 112
        %v354 = vpop.permute.xlu0 %353
        %vm355 = vcmask 916480
        %v356 = vsel %vm355, %v350, %v352
        %v357 = vsel %vm355, %v352, %v354
        %360 = vst [vmem:[#allocation2 + $0x30] sm:$0xf] %v356
        %361 = vst [vmem:[#allocation2 + $0x38] sm:$0xf] %v357
        %362 = vrot.lane.b32.xlu0 %v340, 96
        %v363 = vpop.permute.xlu0 %362
        %364 = vrot.lane.b32.xlu0 %v341, 96
        %v365 = vpop.permute.xlu0 %364
        %366 = vrot.lane.b32.xlu0 %v348, 96
        %v367 = vpop.permute.xlu0 %366
        %vm368 = vcmask 785408
        %v369 = vsel %vm368, %v363, %v365
        %v370 = vsel %vm368, %v365, %v367
        %373 = vst [vmem:[#allocation2 + $0x60] sm:$0xf] %v369
        %374 = vst [vmem:[#allocation2 + $0x68] sm:$0xf] %v370
        %v377 = vunpack.c.l.b16 %v325
        %v378 = vunpack.c.h.b16 %v325
        %v379 = vunpack.c.l.b16 %v326
        %v380 = vpack.c.b16 %v377, %v377
        %v381 = vpack.c.b16 %v378, %v378
        %v382 = vpack.c.b16 %v379, %v379
        %383 = vrot.lane.b32.xlu0 %v380, 127
        %v384 = vpop.permute.xlu0 %383
        %385 = vrot.lane.b32.xlu0 %v381, 127
        %v386 = vpop.permute.xlu0 %385
        %387 = vrot.lane.b32.xlu0 %v382, 127
        %v388 = vpop.permute.xlu0 %387
        %vm389 = vcmask 1039360
        %v390 = vsel %vm389, %v384, %v386
        %v391 = vsel %vm389, %v386, %v388
        %394 = vst [vmem:[#allocation2 + $0x10] sm:$0xf] %v390
        %395 = vst [vmem:[#allocation2 + $0x18] sm:$0xf] %v391
        %396 = vrot.lane.b32.xlu0 %v380, 111
        %v397 = vpop.permute.xlu0 %396
        %398 = vrot.lane.b32.xlu0 %v381, 111
        %v399 = vpop.permute.xlu0 %398
        %400 = vrot.lane.b32.xlu0 %v382, 111
        %v401 = vpop.permute.xlu0 %400
        %vm402 = vcmask 908288
        %v403 = vsel %vm402, %v397, %v399
        %v404 = vsel %vm402, %v399, %v401
        %407 = vst [vmem:[#allocation2 + $0x40] sm:$0xf] %v403
        %408 = vst [vmem:[#allocation2 + $0x48] sm:$0xf] %v404
        %409 = vrot.lane.b32.xlu0 %v380, 95
        %v410 = vpop.permute.xlu0 %409
        %411 = vrot.lane.b32.xlu0 %v381, 95
        %v412 = vpop.permute.xlu0 %411
        %413 = vrot.lane.b32.xlu0 %v382, 95
        %v414 = vpop.permute.xlu0 %413
        %vm415 = vcmask 777216
        %v416 = vsel %vm415, %v410, %v412
        %v417 = vsel %vm415, %v412, %v414
        %420 = vst [vmem:[#allocation2 + $0x70] sm:$0xf] %v416
        %421 = vst [vmem:[#allocation2 + $0x78] sm:$0xf] %v417
        %v422 = vsel %vm318, 1, 0
        %v423 = vsel %vm319, 1, 0
        %v424 = vsel %vm320, 1, 0
        %vm425 = vcmp.eq.s32.totalorder %v422, 1
        %vm426 = vcmp.eq.s32.totalorder %v423, 1
        %vm427 = vcmp.eq.s32.totalorder %v424, 1
        %vm428 = vmpackc.low %vm426, %vm425
        %vm429 = vmpackc.low %vm427, %vm427
        %v430 = vsel %vm428, 65537, 0
        %v431 = vsel %vm429, 65537, 0
        %432 = vrot.lane.b32.xlu0 %v430, 2
        %v433 = vpop.permute.xlu0 %432
        %434 = vrot.lane.b32.xlu0 %v431, 2
        %v435 = vpop.permute.xlu0 %434
        %v436 = vrot.slane %v433, 4
        %vm437 = vcmask 15360
        %v438 = vsel %vm437, %v436, %v433
        %v439 = vsel %vm437, %v436, %v435
        %vm440 = vcmp.ne.s16.totalorder %v438, 0
        %vm441 = vcmp.ne.s16.totalorder %v439, 0
        %v442 = vsel %vm440, %v325, 0
        %v443 = vsel %vm441, %v326, 0
        %v446 = vunpack.c.l.b16 %v442
        %v447 = vunpack.c.h.b16 %v442
        %v448 = vunpack.c.l.b16 %v443
        %v449 = vpack.c.b16 %v446, %v446
        %v450 = vpack.c.b16 %v447, %v447
        %v451 = vpack.c.b16 %v448, %v448
        %452 = vrot.lane.b32.xlu0 %v449, 126
        %v453 = vpop.permute.xlu0 %452
        %454 = vrot.lane.b32.xlu0 %v450, 126
        %v455 = vpop.permute.xlu0 %454
        %456 = vrot.lane.b32.xlu0 %v451, 126
        %v457 = vpop.permute.xlu0 %456
        %vm458 = vcmask 1031168
        %v459 = vsel %vm458, %v453, %v455
        %v460 = vsel %vm458, %v455, %v457
        %463 = vst [vmem:[#allocation2 + $0x20] sm:$0xf] %v459
        %464 = vst [vmem:[#allocation2 + $0x28] sm:$0xf] %v460
        %465 = vrot.lane.b32.xlu0 %v449, 110
        %v466 = vpop.permute.xlu0 %465
        %467 = vrot.lane.b32.xlu0 %v450, 110
        %v468 = vpop.permute.xlu0 %467
        %469 = vrot.lane.b32.xlu0 %v451, 110
        %v470 = vpop.permute.xlu0 %469
        %vm471 = vcmask 900096
        %v472 = vsel %vm471, %v466, %v468
        %v473 = vsel %vm471, %v468, %v470
        %476 = vst [vmem:[#allocation2 + $0x50] sm:$0xf] %v472
        %477 = vst [vmem:[#allocation2 + $0x58] sm:$0xf] %v473
        %478 = vrot.lane.b32.xlu0 %v449, 94
        %v479 = vpop.permute.xlu0 %478
        %480 = vrot.lane.b32.xlu0 %v450, 94
        %v481 = vpop.permute.xlu0 %480
        %482 = vrot.lane.b32.xlu0 %v451, 94
        %v483 = vpop.permute.xlu0 %482
        %vm484 = vcmask 769024
        %v485 = vsel %vm484, %v479, %v481
        %v486 = vsel %vm484, %v481, %v483
        %489 = vst [vmem:[#allocation2 + $0x80] sm:$0xf] %v485
        %490 = vst [vmem:[#allocation2 + $0x88] sm:$0xf] %v486
        %s491 = smul.addr %s321, 4
        %s492 = scalar_lea.vmem %s236, %s491 [#allocation6]
        %v493 = vld [vmem:[%s492] sm:$0xff]
        %v494 = vld [vmem:[%s492 + $0x8] sm:$0xf]
        %v495 = vsel %vm333, %v493, 0
        %v496 = vsel %vm334, %v494, 0
        %v498 = vunpack.c.l.b16 %v495
        %v499 = vunpack.c.h.b16 %v495
        %v500 = vpack.c.b16 %v498, %v498
        %v501 = vpack.c.b16 %v499, %v499
        %504 = vst [vmem:[#allocation2] sm:$0xf0] %v500
        %505 = vst [vmem:[#allocation2 + $0x8] sm:$0xf0] %v501
        %v507 = vunpack.c.l.b16 %v496
        %v508 = vpack.c.b16 %v507, %v507
        %509 = vrot.lane.b32.xlu0 %v500, 112
        %v510 = vpop.permute.xlu0 %509
        %511 = vrot.lane.b32.xlu0 %v501, 112
        %v512 = vpop.permute.xlu0 %511
        %513 = vrot.lane.b32.xlu0 %v508, 112
        %v514 = vpop.permute.xlu0 %513
        %v515 = vsel %vm355, %v510, %v512
        %v516 = vsel %vm355, %v512, %v514
        %519 = vst [vmem:[#allocation2 + $0x30] sm:$0xf0] %v515
        %520 = vst [vmem:[#allocation2 + $0x38] sm:$0xf0] %v516
        %521 = vrot.lane.b32.xlu0 %v500, 96
        %v522 = vpop.permute.xlu0 %521
        %523 = vrot.lane.b32.xlu0 %v501, 96
        %v524 = vpop.permute.xlu0 %523
        %525 = vrot.lane.b32.xlu0 %v508, 96
        %v526 = vpop.permute.xlu0 %525
        %v527 = vsel %vm368, %v522, %v524
        %v528 = vsel %vm368, %v524, %v526
        %531 = vst [vmem:[#allocation2 + $0x60] sm:$0xf0] %v527
        %532 = vst [vmem:[#allocation2 + $0x68] sm:$0xf0] %v528
        %v535 = vunpack.c.l.b16 %v493
        %v536 = vunpack.c.h.b16 %v493
        %v537 = vunpack.c.l.b16 %v494
        %v538 = vpack.c.b16 %v535, %v535
        %v539 = vpack.c.b16 %v536, %v536
        %v540 = vpack.c.b16 %v537, %v537
        %541 = vrot.lane.b32.xlu0 %v538, 127
        %v542 = vpop.permute.xlu0 %541
        %543 = vrot.lane.b32.xlu0 %v539, 127
        %v544 = vpop.permute.xlu0 %543
        %545 = vrot.lane.b32.xlu0 %v540, 127
        %v546 = vpop.permute.xlu0 %545
        %v547 = vsel %vm389, %v542, %v544
        %v548 = vsel %vm389, %v544, %v546
        %551 = vst [vmem:[#allocation2 + $0x10] sm:$0xf0] %v547
        %552 = vst [vmem:[#allocation2 + $0x18] sm:$0xf0] %v548
        %553 = vrot.lane.b32.xlu0 %v538, 111
        %v554 = vpop.permute.xlu0 %553
        %555 = vrot.lane.b32.xlu0 %v539, 111
        %v556 = vpop.permute.xlu0 %555
        %557 = vrot.lane.b32.xlu0 %v540, 111
        %v558 = vpop.permute.xlu0 %557
        %v559 = vsel %vm402, %v554, %v556
        %v560 = vsel %vm402, %v556, %v558
        %563 = vst [vmem:[#allocation2 + $0x40] sm:$0xf0] %v559
        %564 = vst [vmem:[#allocation2 + $0x48] sm:$0xf0] %v560
        %565 = vrot.lane.b32.xlu0 %v538, 95
        %v566 = vpop.permute.xlu0 %565
        %567 = vrot.lane.b32.xlu0 %v539, 95
        %v568 = vpop.permute.xlu0 %567
        %569 = vrot.lane.b32.xlu0 %v540, 95
        %v570 = vpop.permute.xlu0 %569
        %v571 = vsel %vm415, %v566, %v568
        %v572 = vsel %vm415, %v568, %v570
        %575 = vst [vmem:[#allocation2 + $0x70] sm:$0xf0] %v571
        %576 = vst [vmem:[#allocation2 + $0x78] sm:$0xf0] %v572
        %v577 = vsel %vm440, %v493, 0
        %v578 = vsel %vm441, %v494, 0
        %v581 = vunpack.c.l.b16 %v577
        %v582 = vunpack.c.h.b16 %v577
        %v583 = vunpack.c.l.b16 %v578
        %v584 = vpack.c.b16 %v581, %v581
        %v585 = vpack.c.b16 %v582, %v582
        %v586 = vpack.c.b16 %v583, %v583
        %587 = vrot.lane.b32.xlu0 %v584, 126
        %v588 = vpop.permute.xlu0 %587
        %589 = vrot.lane.b32.xlu0 %v585, 126
        %v590 = vpop.permute.xlu0 %589
        %591 = vrot.lane.b32.xlu0 %v586, 126
        %v592 = vpop.permute.xlu0 %591
        %v593 = vsel %vm458, %v588, %v590
        %v594 = vsel %vm458, %v590, %v592
        %597 = vst [vmem:[#allocation2 + $0x20] sm:$0xf0] %v593
        %598 = vst [vmem:[#allocation2 + $0x28] sm:$0xf0] %v594
        %599 = vrot.lane.b32.xlu0 %v584, 110
        %v600 = vpop.permute.xlu0 %599
        %601 = vrot.lane.b32.xlu0 %v585, 110
        %v602 = vpop.permute.xlu0 %601
        %603 = vrot.lane.b32.xlu0 %v586, 110
        %v604 = vpop.permute.xlu0 %603
        %v605 = vsel %vm471, %v600, %v602
        %v606 = vsel %vm471, %v602, %v604
        %609 = vst [vmem:[#allocation2 + $0x50] sm:$0xf0] %v605
        %610 = vst [vmem:[#allocation2 + $0x58] sm:$0xf0] %v606
        %611 = vrot.lane.b32.xlu0 %v584, 94
        %v612 = vpop.permute.xlu0 %611
        %613 = vrot.lane.b32.xlu0 %v585, 94
        %v614 = vpop.permute.xlu0 %613
        %615 = vrot.lane.b32.xlu0 %v586, 94
        %v616 = vpop.permute.xlu0 %615
        %v617 = vsel %vm484, %v612, %v614
        %v618 = vsel %vm484, %v614, %v616
        %621 = vst [vmem:[#allocation2 + $0x80] sm:$0xf0] %v617
        %622 = vst [vmem:[#allocation2 + $0x88] sm:$0xf0] %v618
        %v623 = vld [vmem:[%s2] sm:$0xf]
        %v624 = vld [vmem:[#allocation2] sm:$0xff]
        %v625 = vld [vmem:[#allocation2 + $0x8] sm:$0xff]
        %v626 = vld [vmem:[#allocation2 + $0x10] sm:$0xff]
        %v627 = vld [vmem:[#allocation2 + $0x18] sm:$0xff]
        %v628 = vld [vmem:[#allocation2 + $0x20] sm:$0xff]
        %v629 = vld [vmem:[#allocation2 + $0x28] sm:$0xff]
        %v630 = vld [vmem:[#allocation2 + $0x30] sm:$0xff]
        %v631 = vld [vmem:[#allocation2 + $0x38] sm:$0xff]
        %v632 = vld [vmem:[#allocation2 + $0x40] sm:$0xff]
        %v633 = vld [vmem:[#allocation2 + $0x48] sm:$0xff]
        %v634 = vld [vmem:[#allocation2 + $0x50] sm:$0xff]
        %v635 = vld [vmem:[#allocation2 + $0x58] sm:$0xff]
        %v636 = vld [vmem:[#allocation2 + $0x60] sm:$0xff]
        %v637 = vld [vmem:[#allocation2 + $0x68] sm:$0xff]
        %v638 = vld [vmem:[#allocation2 + $0x70] sm:$0xff]
        %v639 = vld [vmem:[#allocation2 + $0x78] sm:$0xff]
        %v640 = vld [vmem:[#allocation2 + $0x80] sm:$0xff]
        %v641 = vld [vmem:[#allocation2 + $0x88] sm:$0xff]
        %v644 = vunpack.c.l.s4 1983009808
        %v645 = vunpack.c.0.s8 %v644
        %v646 = vlaneseq
        %v647 = vshrl.u32 %v646, 7
        %v648 = vsub.s32 %v645, %v647
        %v649 = vrot.slane %v623, %v648
        %v650 = vcombine.high %v649, %v649
        %vm652 = vcmask 130048
        %v654 = vsel %vm652, %v650, 0
        %656 = vmatprep.subr.bf16.mxu0 %v625
        %657 = vmatpush1.bf16.msra.mxu0 %v624
        %658 = vmatprep.subr.bf16.mxu0 %v627
        %659 = vmatpush1.bf16.msra.mxu0 %v626
        %660 = vmatprep.subr.bf16.mxu0 %v629
        %661 = vmatpush1.bf16.msra.mxu0 %v628
        %662 = vmatprep.subr.bf16.mxu0 %v631
        %663 = vmatpush1.bf16.msra.mxu0 %v630
        %664 = vmatprep.subr.bf16.mxu0 %v633
        %665 = vmatpush1.bf16.msra.mxu0 %v632
        %666 = vmatprep.subr.bf16.mxu0 %v635
        %667 = vmatpush1.bf16.msra.mxu0 %v634
        %668 = vmatprep.subr.bf16.mxu0 %v637
        %669 = vmatpush1.bf16.msra.mxu0 %v636
        %670 = vmatprep.subr.bf16.mxu0 %v639
        %671 = vmatpush1.bf16.msra.mxu0 %v638
        %672 = vmatprep.subr.bf16.mxu0 %v641
        %673 = vmatpush1.bf16.msra.mxu0 %v640
        %674 = vmatprep.subr.bf16.mxu0 0
        %675 = vmatpush1.bf16.msra.mxu0 0
        %676 = vmatprep.subr.bf16.mxu0 0
        %677 = vmatpush1.bf16.msra.mxu0 0
        %678 = vmatprep.subr.bf16.mxu0 0
        %679 = vmatpush1.bf16.msra.mxu0 0
        %680 = vmatprep.subr.bf16.mxu0 0
        %681 = vmatpush1.bf16.msra.mxu0 0
        %682 = vmatprep.subr.bf16.mxu0 0
        %683 = vmatpush1.bf16.msra.mxu0 0
        %684 = vmatprep.subr.bf16.mxu0 0
        %685 = vmatpush1.bf16.msra.mxu0 0
        %686 = vmatprep.subr.bf16.mxu0 0
        %687 = vmatpush1.bf16.msra.mxu0 0
        %688 = vmatprep.mubr.bf16.mxu0 %v654
        %689 = vmatmul.mubr.bf16.gmra.mrb[0].mxu0 %v649
        %v690 = vpop.f32.mrb[0].mxu0
        %v691 = vadd.f32 0.0, %v690
        %v692 = vpop.f32.mrb[0].mxu0
        %v693 = vadd.f32 0.0, %v692
        %v694 = vpop.f32.mrb[0].mxu0
        %v695 = vpop.f32.mrb[0].mxu0
        %696 = vdwg.mxu0
        %v697 = vld [vmem:[%s3] sm:$0xf]
        %699 = vset.pattern.permute.xlu0 0
        %700 = vperm.xlu0 %699, %v697
        %v701 = vpop.permute.xlu0 %700
        %v703 = vmul.f32 %v691, %v701
        %v704 = vmul.f32 %v693, %v701
        %s705 = scalar_lea.vmem %s3, 4
        %v706 = vld [vmem:[%s705] sm:$0xf]
        %708 = vset.pattern.permute.xlu0 0
        %709 = vperm.xlu0 %708, %v706
        %v710 = vpop.permute.xlu0 %709
        %v712 = vadd.f32 %v703, %v710
        %v713 = vadd.f32 %v704, %v710
        %v714 = vmax.f32 %v712, 0.0
        %v715 = vmax.f32 %v713, 0.0
        %v716 = vpack.c.bf16 %v714, %v714
        %v717 = vpack.c.bf16 %v715, %v715
        %v720 = vcombine.low %v716, %v717
        %v722 = vunpack.c.l.s4 1983009808
        %v723 = vunpack.c.0.s8 %v722
        %v724 = vlaneseq
        %v725 = vshrl.u32 %v724, 7
        %v726 = vsub.s32 %v723, %v725
        %v727 = vrot.slane %v720, %v726
        %729 = vst [vmem:[%s265] sm:$0xf] %v727
        %s730 = sand.u32 %s140, 1
        %s731 = scalar_lea.sflag [#allocation5], %s730
        %s732 = sand.u32 %s140, 1
        %s733 = smul.addr %s732, 4
        %s734 = scalar_lea.vmem [#allocation8], %s733
        // Predicated region
        $region45: #{tpu_custom_call.1} parent=35 // pred_check
          %p735 = pneg %p150
        $region46: #{tpu_custom_call.1} parent=35 // pred_check_branch
          %737 = sbr.rel (%p735) target = $region48
        $region47: #{tpu_custom_call.1} parent=35 // pred_region
          %s738 = smul.u32 2, %s29
          %s740 = ssub.s32 64, 64
          %741 = vsyncadd %s731, %s740
          %s742 = smul.addr %s28, 2
          %s743 = sadd.s32 %s738, %s742
          %s744 = smul.addr %s743, 32
          %s745 = scalar_lea.hbm %s4, %s744
          %s747 = sshll.u32 %s734, 4
          %s748 = int_to_ptr.vmem [resolvable:$true] %s747
          %750 = dma.vmem_to_hbm [thread:$0]  %s748, 64, %s745, %s731
        $region48: #{tpu_custom_call.1} parent=35 // pred_fallthru
          _
      $region36: #{tpu_custom_call.1} parent=5 // pred_fallthru
        _
      %p751 = scmp.le.s32.totalorder 2, %s19
      // Predicated region
      $region49: #{tpu_custom_call.1} parent=5 // pred_check
        %p752 = pneg %p751
      $region50: #{tpu_custom_call.1} parent=5 // pred_check_branch
        %754 = sbr.rel (%p752) target = $region52
      $region51: #{tpu_custom_call.1} parent=5 // pred_region
        %s755 = ssub.s32 %s19, 2
        // Predicated region
        $region53: #{tpu_custom_call.1} parent=51 // pred_check
          %p756 = pneg %p156
        $region54: #{tpu_custom_call.1} parent=51 // pred_check_branch
          %758 = sbr.rel (%p756) target = $region56
        $region55: #{tpu_custom_call.1} parent=51 // pred_region
          %s759 = sand.u32 %s141, 1
          %s760 = scalar_lea.sflag [#allocation5], %s759
          %s761 = sand.u32 %s141, 1
          %s762 = smul.addr %s761, 4
          %s763 = scalar_lea.vmem [#allocation8], %s762
          %764 = dma.done %s760, 64
        $region56: #{tpu_custom_call.1} parent=51 // pred_fallthru
          _
      $region52: #{tpu_custom_call.1} parent=5 // pred_fallthru
        _
    $region6: #{tpu_custom_call.1} parent=1 // loop_footer
      %s23 = sadd.s32 1, %s19
    $region7: #{tpu_custom_call.1} parent=1 // loop_footer_branch
      %18 = sbr.rel target = $region3
    $region8: #{tpu_custom_call.1} parent=1 // loop_exit
      _
    %765 = vsyncpa [#allocation4], 1
    %s766 = scalar_lea.sflag [#allocation4], 1
    %767 = vsyncpa %s766, 1
    %768 = vsyncpa [#allocation7], 1
    %s769 = scalar_lea.sflag [#allocation7], 1
    %770 = vsyncpa %s769, 1
    %771 = vsyncpa [#allocation5], 1
    %s772 = scalar_lea.sflag [#allocation5], 1
    %773 = vsyncpa %s772, 1

</llo_original>
